<compile_context>
chip_gen: v6e
topology: v6e:2x2x1
jax: 0.10.0
libtpu: 0.0.40
codegen_flags: <defaults>
</compile_context>

<pallas_src>
import functools

import jax
import jax.numpy as jnp
from jax.experimental import pallas as pl
from jax.experimental.pallas import tpu as pltpu

LN_EPS = 1e-5        # nn.LayerNorm default eps
CONV_KERNEL = 17     # MossFormer ConvModule default kernel_size


def _round_up(n, m):
    return ((n + m - 1) // m) * m


@functools.lru_cache(maxsize=None)
def _roll_matches_numpy():
    """One-time on-device check of pltpu.roll's rotation direction.

    Pins the convention so the conv-tap indexing below is robust across jax versions:
      True  -> pltpu.roll(x, s, 0)[i] == x[(i - s) % n]   (same as jnp.roll)
      False -> pltpu.roll(x, s, 0)[i] == x[(i + s) % n]
    """
    def probe(x_ref, o_ref):
        o_ref[...] = pltpu.roll(x_ref[...], shift=1, axis=0)

    x = jnp.arange(8 * 128, dtype=jnp.float32).reshape(8, 128)
    y = pl.pallas_call(probe, out_shape=jax.ShapeDtypeStruct((8, 128), jnp.float32))(x)
    return bool(jnp.array_equal(y, jnp.roll(x, 1, axis=0)))


def ffconvm_kernel(xc_ref, xl_ref, xr_ref, gamma_ref, beta_ref, w_ref, b_ref,
                   cw_ref, o_ref, *, seq_len, block_t, halo, roll_like_np):
    t = pl.program_id(1)
    rows = block_t + 2 * halo                        # tile rows incl. conv halo

    # Halo-extended input tile (rows, D_in); pieces are 8-row aligned.
    x = jnp.concatenate([xl_ref[...], xc_ref[...], xr_ref[...]], axis=0)
    x = x.astype(jnp.float32)

    # ---- LayerNorm(dim_in), f32, one-pass moments ----
    mu = jnp.mean(x, axis=-1, keepdims=True)
    var = jnp.mean(x * x, axis=-1, keepdims=True) - mu * mu
    xn = (x - mu) * jax.lax.rsqrt(var + LN_EPS)
    xn = xn * gamma_ref[0] + beta_ref[0]

    # ---- Linear(dim_in -> dim_out) on the MXU (bf16 in, f32 accumulate) + SiLU ----
    u = jnp.dot(xn.astype(jnp.bfloat16), w_ref[...],
                preferred_element_type=jnp.float32) + b_ref[0]
    u = u * jax.nn.sigmoid(u)                        # SiLU (sigmoid goes to the EUP)

    # Zero rows outside the real sequence: the sequence edges, the right-tail padding and
    # the clamped halo blocks of the first/last tiles all fall outside [0, seq_len).
    g = t * block_t - halo + jax.lax.broadcasted_iota(jnp.int32, (rows, 1), 0)
    u = jnp.where((g >= 0) & (g < seq_len), u, 0.0)

    # ---- Depthwise Conv1d (kernel K, 'same', no bias); the ConvModule residual is already
    # folded into the center tap by the wrapper. Time shifts go through the XLU via roll;
    # no wraparound reaches the first `block_t` rows because every tap shift k <= 2*halo.
    acc = cw_ref[0, :] * u
    for k in range(1, cw_ref.shape[0]):              # static unroll over the remaining taps
        shift = (rows - k) % rows if roll_like_np else k
        acc = acc + cw_ref[k, :] * pltpu.roll(u, shift=shift, axis=0)

    o_ref[...] = acc[:block_t, :].astype(o_ref.dtype)

    # TODO(synk): training-mode dropout (pltpu.prng_*) not applied here (eval-mode identity).


def ffconvm_forward(x, gamma, beta, W, b, conv_w, *, block_t=256):
    """FFConvM forward: LayerNorm -> Linear -> SiLU -> depthwise conv + residual (eval mode)."""
    B, T, Din = x.shape
    Dout = W.shape[1]
    K = conv_w.shape[0]
    halo = (K - 1) // 2                               # 'same' conv padding (odd K)
    assert K % 2 == 1 and halo % 8 == 0, "halo BlockSpecs assume odd K with (K-1)/2 % 8 == 0"

    # Time tiling: tT output rows per grid step (+ halo rows recomputed on each side).
    align = max(8, halo)
    tT = _round_up(min(block_t, T), align)
    nT = -(-T // tT)
    T_round = nT * tT
    x_p = x if T_round == T else jnp.pad(x, ((0, 0), (0, T_round - T), (0, 0)))

    # Fold the ConvModule residual into the center tap:  u + conv(u) == conv'(u).
    cw_fused = conv_w.astype(jnp.float32).at[halo, :].add(1.0)
    Wb = W.astype(jnp.bfloat16)                       # bf16 weights for the MXU

    hb = tT // halo                                   # halo-block units per time tile
    n_hblocks = T_round // halo
    kernel = functools.partial(
        ffconvm_kernel, seq_len=T, block_t=tT, halo=halo,
        roll_like_np=_roll_matches_numpy())

    out = pl.pallas_call(
        kernel,
        out_shape=jax.ShapeDtypeStruct((B, T_round, Dout), jnp.float32),
        grid_spec=pltpu.PrefetchScalarGridSpec(
            num_scalar_prefetch=0,
            grid=(B, nT),
            in_specs=[
                # center tile of the (zero-tail-padded) input
                pl.BlockSpec((pl.Squeezed(), tT, Din), lambda bb, tt: (bb, tt, 0)),
                # left conv halo (`halo`-row blocks), clamped at the sequence start
                pl.BlockSpec((pl.Squeezed(), halo, Din),
                             lambda bb, tt: (bb, jnp.maximum(tt * hb - 1, 0), 0)),
                # right conv halo (`halo`-row blocks), clamped at the sequence end
                pl.BlockSpec((pl.Squeezed(), halo, Din),
                             lambda bb, tt: (bb, jnp.minimum((tt + 1) * hb,
                                                             n_hblocks - 1), 0)),
                # parameters: constant block index -> fetched once, stay VMEM-resident
                pl.BlockSpec((1, Din), lambda bb, tt: (0, 0)),
                pl.BlockSpec((1, Din), lambda bb, tt: (0, 0)),
                pl.BlockSpec((Din, Dout), lambda bb, tt: (0, 0)),
                pl.BlockSpec((1, Dout), lambda bb, tt: (0, 0)),
                pl.BlockSpec((K, Dout), lambda bb, tt: (0, 0)),
            ],
            out_specs=pl.BlockSpec((pl.Squeezed(), tT, Dout),
                                   lambda bb, tt: (bb, tt, 0)),
        ),
        compiler_params=pltpu.CompilerParams(
            dimension_semantics=("parallel", "parallel"),   # megacore-shardable grid
            vmem_limit_bytes=32 * 1024 * 1024,
        ),
    )(x_p, x_p, x_p, gamma, beta, Wb, b, cw_fused)

    return out if T_round == T else out[:, :T, :]


def ffconvm_reference(x, gamma, beta, W, b, conv_w):
    """Pure-JAX reference mirroring the PyTorch forward (eval mode, bf16 MXU matmul)."""
    mu = x.mean(-1, keepdims=True)
    var = ((x - mu) ** 2).mean(-1, keepdims=True)
    xn = (x - mu) / jnp.sqrt(var + LN_EPS) * gamma[0] + beta[0]
    u = jnp.dot(xn.astype(jnp.bfloat16), W.astype(jnp.bfloat16),
                preferred_element_type=jnp.float32) + b[0]
    u = u * jax.nn.sigmoid(u)                         # SiLU
    K = conv_w.shape[0]
    pad = (K - 1) // 2
    up = jnp.pad(u, ((0, 0), (pad, pad), (0, 0)))
    conv = sum(conv_w[k] * up[:, k:k + u.shape[1], :] for k in range(K))
    return u + conv


if __name__ == "__main__":
    # Small shapes consistent with the module: FLASH_ShareA_FFConvM's `to_qk` branch is
    # FFConvM(dim_in=dim, dim_out=query_key_dim=128). T=80 with block_t=32 exercises
    # multi-tile halos, halo clamping at both sequence ends, and tail masking.
    B, T, DIM_IN, DIM_OUT = 2, 80, 128, 128

    key = jax.random.PRNGKey(0)
    kx, kw, kb, kc = jax.random.split(key, 4)

    x = jax.random.normal(kx, (B, T, DIM_IN), dtype=jnp.float32)

    # LayerNorm params (PyTorch default init: gamma=1, beta=0)
    gamma = jnp.ones((1, DIM_IN), jnp.float32)
    beta = jnp.zeros((1, DIM_IN), jnp.float32)

    # Linear(dim_in, dim_out): stored as (D_in, D_out) so y = x @ W + b
    W = jax.random.normal(kw, (DIM_IN, DIM_OUT), dtype=jnp.float32) * 0.1
    b = jax.random.normal(kb, (1, DIM_OUT), dtype=jnp.float32) * 0.1

    # Depthwise Conv1d weight: PyTorch shape (D_out, 1, K) -> stored as (K, D_out)
    conv_w = jax.random.normal(kc, (CONV_KERNEL, DIM_OUT), dtype=jnp.float32) * 0.1

    out = ffconvm_forward(x, gamma, beta, W, b, conv_w, block_t=32)
    out = jax.block_until_ready(out)

    ref = ffconvm_reference(x, gamma, beta, W, b, conv_w)
    assert out.shape == (B, T, DIM_OUT)
    assert jnp.allclose(out, ref, atol=1e-2, rtol=1e-2), "mismatch vs JAX reference"

    print("KERNEL_OK")
</pallas_src>

<mosaic_0001>
module attributes {stable_mosaic.version = 11 : i64} {
  func.func @probe(%arg0: memref<8x128xf32, #tpu.memory_space<vmem>>, %arg1: memref<8x128xf32, #tpu.memory_space<vmem>>) attributes {dimension_semantics = [], scalar_prefetch = 0 : i64, scratch_operands = 0 : i64, tpu.core_type = #tpu.core_type<tc>} {
    %c0 = arith.constant 0 : index
    %c0_0 = arith.constant 0 : index
    %0 = vector.load %arg0[%c0, %c0_0] : memref<8x128xf32, #tpu.memory_space<vmem>>, vector<8x128xf32>
    %c1_i32 = arith.constant 1 : i32
    %1 = tpu.dynamic_rotate %0 by %c1_i32 dim 0 : vector<8x128xf32>, i32 -> vector<8x128xf32>
    %c0_1 = arith.constant 0 : index
    %c0_2 = arith.constant 0 : index
    %2 = vector.load %arg1[%c0_1, %c0_2] : memref<8x128xf32, #tpu.memory_space<vmem>>, vector<8x128xf32>
    tpu.vector_store %arg1[%c0_1, %c0_2], %1 {strides = array<i32>} : memref<8x128xf32, #tpu.memory_space<vmem>>, vector<8x128xf32>,
    return
  }
}

</mosaic_0001>

<llo_original>
// kernel: tpu_custom_call.1
$region0: #{tpu_custom_call.1}
  #allocation0 [shape = 'u32[]', space=smem, size = 0x4, offset = 0x4, fixed_abs, tag = 'smem constant byte address 0x4 - core index']
  #allocation1 [shape = 'u32[144,128]{1,0:T(1,128)}', space=vmem, size = 0x12000, scoped, tag = 'internal scratch']
  %s0 = inlined_call_operand.hbm [shape: f32[8,128], index: 0, kind: input, shape index: {}]
  %s1 = inlined_call_operand.hbm [shape: f32[8,128], index: 1, kind: output, shape index: {}]
  %s2 = sld [smem:[#allocation0]]
  $region18: #{tpu_custom_call.1} parent=0
    _
  %s4 = ssub.s32 1, %s2
  %s5 = scalar_select 0, %s4, %s2
  $region1: #{tpu_custom_call.1} parent=0
    #allocation2 [shape = 'u8[4096]{0}', space=vmem, size = 0x1000, scoped, tag = 'input window, operand 0, single buffered']
    #allocation3 [shape = 's32[1]{0}', space=sflag, size = 0x4, scoped, tag = 'scoped memory for tpu_custom_call.1']
    #allocation4 [shape = 's32[1]{0}', space=sflag, size = 0x4, scoped, tag = 'scoped memory for tpu_custom_call.1']
    #allocation5 [shape = 'u8[4096]{0}', space=vmem, size = 0x1000, scoped, tag = 'output window, operand 0, single buffered']
    %6 = vsyncpa [#allocation3], 0
    %7 = vsyncpa [#allocation4], 0
    // Predicated region
    $region2: #{tpu_custom_call.1} parent=1 // pred_check
      _
    $region3: #{tpu_custom_call.1} parent=1 // pred_check_branch
      %9 = sbr.rel (0) target = $region5
    $region4: #{tpu_custom_call.1} parent=1 // pred_region
      %s11 = ssub.s32 128, 128
      %12 = vsyncadd [#allocation3], %s11
      %s14 = sshll.u32 [#allocation2], 4
      %s15 = int_to_ptr.vmem [resolvable:$true] %s14
      %17 = dma.hbm_to_vmem [thread:$0]  %s0, 128, %s15, [#allocation3]
    $region5: #{tpu_custom_call.1} parent=1 // pred_fallthru
      _
    // Predicated region
    $region6: #{tpu_custom_call.1} parent=1 // pred_check
      _
    $region7: #{tpu_custom_call.1} parent=1 // pred_check_branch
      %19 = sbr.rel (0) target = $region9
    $region8: #{tpu_custom_call.1} parent=1 // pred_region
      %20 = dma.done [#allocation3], 128
    $region9: #{tpu_custom_call.1} parent=1 // pred_fallthru
      _
    %v21 = vld [vmem:[#allocation2] sm:$0xff]
    %v22 = vrot.slane %v21, 7
    %23 = vst [vmem:[#allocation5] sm:$0xff] %v22
    // Predicated region
    $region10: #{tpu_custom_call.1} parent=1 // pred_check
      _
    $region11: #{tpu_custom_call.1} parent=1 // pred_check_branch
      %25 = sbr.rel (0) target = $region13
    $region12: #{tpu_custom_call.1} parent=1 // pred_region
      %s27 = ssub.s32 128, 128
      %28 = vsyncadd [#allocation4], %s27
      %s30 = sshll.u32 [#allocation5], 4
      %s31 = int_to_ptr.vmem [resolvable:$true] %s30
      %33 = dma.vmem_to_hbm [thread:$0]  %s31, 128, %s1, [#allocation4]
    $region13: #{tpu_custom_call.1} parent=1 // pred_fallthru
      _
    // Predicated region
    $region14: #{tpu_custom_call.1} parent=1 // pred_check
      _
    $region15: #{tpu_custom_call.1} parent=1 // pred_check_branch
      %35 = sbr.rel (0) target = $region17
    $region16: #{tpu_custom_call.1} parent=1 // pred_region
      %36 = dma.done [#allocation4], 128
    $region17: #{tpu_custom_call.1} parent=1 // pred_fallthru
      _
    %37 = vsyncpa [#allocation3], 1
    %38 = vsyncpa [#allocation4], 1

</llo_original>
